<compile_context>
chip_gen: v6e
topology: v6e:2x2x1
jax: 0.10.0
libtpu: 0.0.40
codegen_flags: <defaults>
</compile_context>

<pallas_src>
import functools

import jax
import jax.numpy as jnp
from jax import lax
from jax.experimental import pallas as pl
from jax.experimental.pallas import tpu as pltpu


def _round_up(x, m):
    return ((x + m - 1) // m) * m


def lm_head_kernel(h_ref, w_ref, o_ref):
    """One (M-tile, vocab-tile) step of logits = H @ W^T.

    h_ref: (tm, K)  hidden tile (resident across the inner vocab axis)
    w_ref: (tn, K)  embedding-weight tile, natural [vocab, n_embd] layout
    o_ref: (tm, tn) output logits tile
    """
    o_ref[...] = lax.dot_general(
        h_ref[...],
        w_ref[...],
        dimension_numbers=(((1,), (1,)), ((), ())),  # contract n_embd of both
        preferred_element_type=jnp.float32,
    ).astype(o_ref.dtype)


@functools.partial(jax.jit, static_argnames=("tm", "tn", "compute_dtype"))
def openai_gpt_lm_head(hidden_state, embedding_weights, *, tm=None, tn=None,
                       compute_dtype=jnp.bfloat16):
    """lm_logits = hidden_state @ embedding_weights.T  (no bias)."""
    B, S, E = hidden_state.shape
    V, E2 = embedding_weights.shape
    assert E == E2, "n_embd mismatch between hidden state and embedding weights"

    out_dtype = hidden_state.dtype
    M, K, N = B * S, E, V

    # Tile sizes: bounded M tile, wide lane-dense vocab tile (multiple of 128).
    if tm is None:
        tm = min(256, _round_up(M, 8))
    if tn is None:
        tn = min(512, _round_up(N, 128))

    M_pad = _round_up(M, tm)
    N_pad = _round_up(N, tn)

    h2d = hidden_state.reshape(M, K).astype(compute_dtype)
    w = embedding_weights.astype(compute_dtype)  # no transpose: kept as [V, E]
    if M_pad != M:
        h2d = jnp.pad(h2d, ((0, M_pad - M), (0, 0)))
    if N_pad != N:
        w = jnp.pad(w, ((0, N_pad - N), (0, 0)))

    # Vocab axis is innermost -> the H block index (i, 0) is constant across
    # consecutive steps and the hidden tile stays resident in VMEM.
    grid = (M_pad // tm, N_pad // tn)

    out2d = pl.pallas_call(
        lm_head_kernel,
        out_shape=jax.ShapeDtypeStruct((M_pad, N_pad), out_dtype),
        grid_spec=pltpu.PrefetchScalarGridSpec(
            num_scalar_prefetch=0,
            grid=grid,
            in_specs=[
                pl.BlockSpec((tm, K), lambda i, j: (i, 0)),  # hidden: resident per i
                pl.BlockSpec((tn, K), lambda i, j: (j, 0)),  # weight: streams over vocab
            ],
            out_specs=pl.BlockSpec((tm, tn), lambda i, j: (i, j)),
        ),
        compiler_params=pltpu.CompilerParams(
            dimension_semantics=("parallel", "parallel"),
            vmem_limit_bytes=48 * 1024 * 1024,
        ),
    )(h2d, w)

    # TODO(synk): fusing the downstream softmax/cross-entropy would remove the
    # [M, V] logits writeback, which is the mem-bound floor of this op.
    return out2d[:M, :N].reshape(B, S, N)


if __name__ == "__main__":
    # Small shapes consistent with the module's forward:
    #   batch=2, seq=8, n_embd=32, vocab_size=200
    # (vocab deliberately NOT a multiple of 128 to exercise the padding path).
    B, S, E, V = 2, 8, 32, 200

    key = jax.random.PRNGKey(0)
    k_h, k_w = jax.random.split(key)
    hidden_state = jax.random.normal(k_h, (B, S, E), dtype=jnp.float32)
    # Deterministic synthetic tied embedding weights [vocab, n_embd]
    embedding_weights = jax.random.normal(k_w, (V, E), dtype=jnp.float32) * 0.02

    logits = openai_gpt_lm_head(hidden_state, embedding_weights)
    jax.block_until_ready(logits)

    # Reference: same math as nn.Linear with tied weight (no bias), f32.
    ref_f32 = jnp.einsum("bse,ve->bsv", hidden_state, embedding_weights)

    assert logits.shape == (B, S, V)
    assert logits.dtype == hidden_state.dtype
    # bf16 operands + f32 accumulation -> compare vs f32 ref with loose tol.
    assert jnp.allclose(logits, ref_f32, atol=1e-2, rtol=1e-2), (
        "kernel output mismatch vs f32 reference"
    )

    print("KERNEL_OK")
</pallas_src>

<mosaic_0001>
module attributes {stable_mosaic.version = 11 : i64} {
  func.func @lm_head_kernel(%arg0: i32, %arg1: i32, %arg2: memref<16x32xbf16, #tpu.memory_space<vmem>>, %arg3: memref<256x32xbf16, #tpu.memory_space<vmem>>, %arg4: memref<16x256xf32, #tpu.memory_space<vmem>>) attributes {dimension_semantics = [#tpu.dimension_semantics<parallel>, #tpu.dimension_semantics<parallel>], iteration_bounds = array<i64: 1, 1>, scalar_prefetch = 0 : i64, scratch_operands = 0 : i64, tpu.core_type = #tpu.core_type<tc>, window_params = [{transform_indices = @transform_0, window_bounds = array<i64: 16, 32>}, {transform_indices = @transform_1, window_bounds = array<i64: 256, 32>}, {transform_indices = @transform_2, window_bounds = array<i64: 16, 256>}]} {
    %c0 = arith.constant 0 : index
    %c0_0 = arith.constant 0 : index
    %0 = vector.load %arg2[%c0, %c0_0] : memref<16x32xbf16, #tpu.memory_space<vmem>>, vector<16x32xbf16>
    %c0_1 = arith.constant 0 : index
    %c0_2 = arith.constant 0 : index
    %1 = vector.load %arg3[%c0_1, %c0_2] : memref<256x32xbf16, #tpu.memory_space<vmem>>, vector<256x32xbf16>
    %cst = arith.constant dense<0.000000e+00> : vector<16x256xf32>
    %2 = tpu.matmul %0, %1, %cst {dimension_numbers = #tpu.dot_dimension_numbers<[1], [1], [0], [0], [0, 0, 1, 0], [], []>} : vector<16x32xbf16>, vector<256x32xbf16>, vector<16x256xf32> -> vector<16x256xf32>
    %c0_3 = arith.constant 0 : index
    %c0_4 = arith.constant 0 : index
    %3 = vector.load %arg4[%c0_3, %c0_4] : memref<16x256xf32, #tpu.memory_space<vmem>>, vector<16x256xf32>
    tpu.vector_store %arg4[%c0_3, %c0_4], %2 {strides = array<i32>} : memref<16x256xf32, #tpu.memory_space<vmem>>, vector<16x256xf32>,
    return
  }
  func.func @transform_0(%arg0: i32, %arg1: i32) -> (i32, i32) {
    %c0_i32 = arith.constant 0 : i32
    %c0_i32_0 = arith.constant 0 : i32
    return %arg0, %c0_i32 : i32, i32
  }
  func.func @transform_1(%arg0: i32, %arg1: i32) -> (i32, i32) {
    %c0_i32 = arith.constant 0 : i32
    %c0_i32_0 = arith.constant 0 : i32
    return %arg1, %c0_i32 : i32, i32
  }
  func.func @transform_2(%arg0: i32, %arg1: i32) -> (i32, i32) {
    %c0_i32 = arith.constant 0 : i32
    return %arg0, %arg1 : i32, i32
  }
}

</mosaic_0001>

<llo_original>
// kernel: openai_gpt_lm_head.1
$region0: #{openai_gpt_lm_head.1}
  #allocation0 [shape = 'u32[]', space=smem, size = 0x4, offset = 0x4, fixed_abs, tag = 'smem constant byte address 0x4 - core index']
  #allocation1 [shape = 'u32[144,128]{1,0:T(1,128)}', space=vmem, size = 0x12000, scoped, tag = 'internal scratch']
  %s0 = inlined_call_operand.vmem [shape: bf16[16,32], index: 0, kind: input, shape index: {}]
  %s1 = inlined_call_operand.vmem [shape: bf16[256,32], index: 1, kind: input, shape index: {}]
  %s2 = inlined_call_operand.vmem [shape: f32[16,256], index: 2, kind: output, shape index: {}]
  %s3 = sld [smem:[#allocation0]]
  $region18: #{openai_gpt_lm_head.1} parent=0
    _
  %s5 = ssub.s32 1, %s3
  %s6 = scalar_select 0, %s5, %s3
  // Predicated region
  $region2: #{openai_gpt_lm_head.1} parent=0 // pred_check
    _
  $region3: #{openai_gpt_lm_head.1} parent=0 // pred_check_branch
    %8 = sbr.rel (0) target = $region5
  $region4: #{openai_gpt_lm_head.1} parent=0 // pred_region
    _
  $region5: #{openai_gpt_lm_head.1} parent=0 // pred_fallthru
    _
  // Predicated region
  $region6: #{openai_gpt_lm_head.1} parent=0 // pred_check
    _
  $region7: #{openai_gpt_lm_head.1} parent=0 // pred_check_branch
    %10 = sbr.rel (0) target = $region9
  $region8: #{openai_gpt_lm_head.1} parent=0 // pred_region
    _
  $region9: #{openai_gpt_lm_head.1} parent=0 // pred_fallthru
    _
  %v12 = vld [vmem:[%s0] sm:$0xf]
  %v13 = vld [vmem:[%s0 + $0x4] sm:$0xf]
  %v14 = vld [vmem:[%s1] sm:$0xf]
  %v15 = vld [vmem:[%s1 + $0x4] sm:$0xf]
  %v16 = vld [vmem:[%s1 + $0x8] sm:$0xf]
  %v17 = vld [vmem:[%s1 + $0xc] sm:$0xf]
  %v18 = vld [vmem:[%s1 + $0x10] sm:$0xf]
  %v19 = vld [vmem:[%s1 + $0x14] sm:$0xf]
  %v20 = vld [vmem:[%s1 + $0x18] sm:$0xf]
  %v21 = vld [vmem:[%s1 + $0x1c] sm:$0xf]
  %v22 = vld [vmem:[%s1 + $0x20] sm:$0xf]
  %v23 = vld [vmem:[%s1 + $0x24] sm:$0xf]
  %v24 = vld [vmem:[%s1 + $0x28] sm:$0xf]
  %v25 = vld [vmem:[%s1 + $0x2c] sm:$0xf]
  %v26 = vld [vmem:[%s1 + $0x30] sm:$0xf]
  %v27 = vld [vmem:[%s1 + $0x34] sm:$0xf]
  %v28 = vld [vmem:[%s1 + $0x38] sm:$0xf]
  %v29 = vld [vmem:[%s1 + $0x3c] sm:$0xf]
  %v30 = vld [vmem:[%s1 + $0x40] sm:$0xf]
  %v31 = vld [vmem:[%s1 + $0x44] sm:$0xf]
  %v32 = vld [vmem:[%s1 + $0x48] sm:$0xf]
  %v33 = vld [vmem:[%s1 + $0x4c] sm:$0xf]
  %v34 = vld [vmem:[%s1 + $0x50] sm:$0xf]
  %v35 = vld [vmem:[%s1 + $0x54] sm:$0xf]
  %v36 = vld [vmem:[%s1 + $0x58] sm:$0xf]
  %v37 = vld [vmem:[%s1 + $0x5c] sm:$0xf]
  %v38 = vld [vmem:[%s1 + $0x60] sm:$0xf]
  %v39 = vld [vmem:[%s1 + $0x64] sm:$0xf]
  %v40 = vld [vmem:[%s1 + $0x68] sm:$0xf]
  %v41 = vld [vmem:[%s1 + $0x6c] sm:$0xf]
  %v42 = vld [vmem:[%s1 + $0x70] sm:$0xf]
  %v43 = vld [vmem:[%s1 + $0x74] sm:$0xf]
  %v44 = vld [vmem:[%s1 + $0x78] sm:$0xf]
  %v45 = vld [vmem:[%s1 + $0x7c] sm:$0xf]
  %v48 = vunpack.c.l.b16 %v12
  %v49 = vunpack.c.l.b16 %v13
  %v50 = vpack.c.b16 %v49, %v48
  %v83 = vunpack.c.l.b16 %v14
  %v84 = vunpack.c.l.b16 %v15
  %v85 = vunpack.c.l.b16 %v16
  %v86 = vunpack.c.l.b16 %v17
  %v87 = vunpack.c.l.b16 %v18
  %v88 = vunpack.c.l.b16 %v19
  %v89 = vunpack.c.l.b16 %v20
  %v90 = vunpack.c.l.b16 %v21
  %v91 = vunpack.c.l.b16 %v22
  %v92 = vunpack.c.l.b16 %v23
  %v93 = vunpack.c.l.b16 %v24
  %v94 = vunpack.c.l.b16 %v25
  %v95 = vunpack.c.l.b16 %v26
  %v96 = vunpack.c.l.b16 %v27
  %v97 = vunpack.c.l.b16 %v28
  %v98 = vunpack.c.l.b16 %v29
  %v99 = vunpack.c.l.b16 %v30
  %v100 = vunpack.c.l.b16 %v31
  %v101 = vunpack.c.l.b16 %v32
  %v102 = vunpack.c.l.b16 %v33
  %v103 = vunpack.c.l.b16 %v34
  %v104 = vunpack.c.l.b16 %v35
  %v105 = vunpack.c.l.b16 %v36
  %v106 = vunpack.c.l.b16 %v37
  %v107 = vunpack.c.l.b16 %v38
  %v108 = vunpack.c.l.b16 %v39
  %v109 = vunpack.c.l.b16 %v40
  %v110 = vunpack.c.l.b16 %v41
  %v111 = vunpack.c.l.b16 %v42
  %v112 = vunpack.c.l.b16 %v43
  %v113 = vunpack.c.l.b16 %v44
  %v114 = vunpack.c.l.b16 %v45
  %v115 = vpack.c.b16 %v84, %v83
  %v116 = vpack.c.b16 %v86, %v85
  %v117 = vpack.c.b16 %v88, %v87
  %v118 = vpack.c.b16 %v90, %v89
  %v119 = vpack.c.b16 %v92, %v91
  %v120 = vpack.c.b16 %v94, %v93
  %v121 = vpack.c.b16 %v96, %v95
  %v122 = vpack.c.b16 %v98, %v97
  %v123 = vpack.c.b16 %v100, %v99
  %v124 = vpack.c.b16 %v102, %v101
  %v125 = vpack.c.b16 %v104, %v103
  %v126 = vpack.c.b16 %v106, %v105
  %v127 = vpack.c.b16 %v108, %v107
  %v128 = vpack.c.b16 %v110, %v109
  %v129 = vpack.c.b16 %v112, %v111
  %v130 = vpack.c.b16 %v114, %v113
  %vm131 = vcmask 261120
  %v133 = vsel %vm131, %v50, 0
  %v136 = vsel %vm131, %v115, 0
  %v139 = vsel %vm131, %v116, 0
  %v142 = vsel %vm131, %v117, 0
  %v145 = vsel %vm131, %v118, 0
  %v148 = vsel %vm131, %v119, 0
  %v151 = vsel %vm131, %v120, 0
  %v154 = vsel %vm131, %v121, 0
  %v157 = vsel %vm131, %v122, 0
  %v160 = vsel %vm131, %v123, 0
  %v163 = vsel %vm131, %v124, 0
  %v166 = vsel %vm131, %v125, 0
  %v169 = vsel %vm131, %v126, 0
  %v172 = vsel %vm131, %v127, 0
  %v175 = vsel %vm131, %v128, 0
  %v178 = vsel %vm131, %v129, 0
  %v181 = vsel %vm131, %v130, 0
  %183 = vmatprep.subr.bf16.mxu0 0
  %184 = vmatpush1.bf16.xpose.msra.mxu0 %v157
  %185 = vmatprep.subr.bf16.mxu0 0
  %186 = vmatpush1.bf16.xpose.msra.mxu0 %v154
  %187 = vmatprep.subr.bf16.mxu0 0
  %188 = vmatpush1.bf16.xpose.msra.mxu0 %v151
  %189 = vmatprep.subr.bf16.mxu0 0
  %190 = vmatpush1.bf16.xpose.msra.mxu0 %v148
  %191 = vmatprep.subr.bf16.mxu0 0
  %192 = vmatpush1.bf16.xpose.msra.mxu0 %v145
  %193 = vmatprep.subr.bf16.mxu0 0
  %194 = vmatpush1.bf16.xpose.msra.mxu0 %v142
  %195 = vmatprep.subr.bf16.mxu0 0
  %196 = vmatpush1.bf16.xpose.msra.mxu0 %v139
  %197 = vmatprep.subr.bf16.mxu0 0
  %198 = vmatpush1.bf16.xpose.msra.mxu0 %v136
  %199 = vmatprep.subr.bf16.mxu0 0
  %200 = vmatpush2.bf16.xpose.msra.mxu0 %v181
  %201 = vmatprep.subr.bf16.mxu0 0
  %202 = vmatpush2.bf16.xpose.msra.mxu0 %v178
  %203 = vmatprep.subr.bf16.mxu0 0
  %204 = vmatpush2.bf16.xpose.msra.mxu0 %v175
  %205 = vmatprep.subr.bf16.mxu0 0
  %206 = vmatpush2.bf16.xpose.msra.mxu0 %v172
  %207 = vmatprep.subr.bf16.mxu0 0
  %208 = vmatpush2.bf16.xpose.msra.mxu0 %v169
  %209 = vmatprep.subr.bf16.mxu0 0
  %210 = vmatpush2.bf16.xpose.msra.mxu0 %v166
  %211 = vmatprep.subr.bf16.mxu0 0
  %212 = vmatpush2.bf16.xpose.msra.mxu0 %v163
  %213 = vmatprep.subr.bf16.mxu0 0
  %214 = vmatpush2.bf16.xpose.msra.mxu0 %v160
  %215 = vmatprep.mubr.bf16.mxu0 0
  %216 = vmatmul.mubr.bf16.gmra.mxu0 %v133
  %v217 = vpop.f32.mrf.mxu0
  %v218 = vadd.f32 0.0, %v217
  %v219 = vpop.f32.mrf.mxu0
  %v220 = vadd.f32 0.0, %v219
  %v221 = vpop.f32.mrf.mxu0
  %v222 = vadd.f32 0.0, %v221
  %v223 = vpop.f32.mrf.mxu0
  %v224 = vadd.f32 0.0, %v223
  %225 = vdwg.mxu0
  %226 = vst [vmem:[%s2] sm:$0xff] %v218
  %227 = vst [vmem:[%s2 + $0x8] sm:$0xff] %v220
  %228 = vst [vmem:[%s2 + $0x10] sm:$0xff] %v222
  %229 = vst [vmem:[%s2 + $0x18] sm:$0xff] %v224
  // Predicated region
  $region10: #{openai_gpt_lm_head.1} parent=0 // pred_check
    _
  $region11: #{openai_gpt_lm_head.1} parent=0 // pred_check_branch
    %231 = sbr.rel (0) target = $region13
  $region12: #{openai_gpt_lm_head.1} parent=0 // pred_region
    _
  $region13: #{openai_gpt_lm_head.1} parent=0 // pred_fallthru
    _
  // Predicated region
  $region14: #{openai_gpt_lm_head.1} parent=0 // pred_check
    _
  $region15: #{openai_gpt_lm_head.1} parent=0 // pred_check_branch
    %233 = sbr.rel (0) target = $region17
  $region16: #{openai_gpt_lm_head.1} parent=0 // pred_region
    _
  $region17: #{openai_gpt_lm_head.1} parent=0 // pred_fallthru
    _

</llo_original>
